<compile_context>
chip_gen: v5e
topology: v5e:2x2
jax: 0.10.0
libtpu: 0.0.40
codegen_flags: <defaults>
</compile_context>

<pallas_src>
import functools

import jax
import jax.numpy as jnp
from jax import lax
from jax.experimental import pallas as pl
from jax.experimental.pallas import tpu as pltpu

NEG_SLOPE = 0.01   # nn.LeakyReLU default
BN_EPS = 1e-5      # nn.BatchNorm2d default


def conv_bn_lrelu_kernel(p_ref, w_ref, g_ref, beta_ref, o_ref, s1_ref, s2_ref,
                         *, inv_n):
    """p_ref:(9*Cin, TILE)  w_ref:(Cout, 9*Cin)  g/beta:(Cout, 1)
    o_ref:(Cout, NHW_pad) VMEM-resident output (constant index_map)
    s1/s2:(Cout, 1) f32 VMEM scratch (BN sum / sum-of-squares accumulators)
    inv_n: compile-time 1/(true NHW) for the BN mean/var."""
    t = pl.program_id(0)
    num_t = pl.num_programs(0)
    tile = p_ref.shape[1]

    @pl.when(t == 0)
    def _():
        s1_ref[...] = jnp.zeros_like(s1_ref)
        s2_ref[...] = jnp.zeros_like(s2_ref)

    # One MXU matmul per tile: (Cout, K) @ (K, TILE), f32 accumulation.
    acc = jnp.dot(w_ref[...], p_ref[...], preferred_element_type=jnp.float32)

    # Per-tile BN statistics (VPU/XLU have slack next to the tiny matmul).
    # Zero-padded columns produce acc == 0 -> contribute nothing to s1/s2.
    s1_ref[...] += jnp.sum(acc, axis=1, keepdims=True)
    s2_ref[...] += jnp.sum(acc * acc, axis=1, keepdims=True)

    # Write the conv tile straight into the resident output block.
    start = pl.multiple_of(t * tile, tile)
    o_ref[:, pl.ds(start, tile)] = acc

    # Last grid step: finalize BN (training mode, biased var) + LeakyReLU
    # in-place on the resident output; single lane-dense pass.
    @pl.when(t == num_t - 1)
    def _():
        mean = s1_ref[...] * inv_n                       # (Cout, 1)
        var = s2_ref[...] * inv_n - mean * mean          # E[x^2] - mean^2 (f32)
        inv_std = lax.rsqrt(var + BN_EPS)                # EUP
        scale = g_ref[...] * inv_std
        shift = beta_ref[...] - mean * scale
        y = o_ref[...] * scale + shift
        o_ref[...] = jnp.where(y >= 0, y, NEG_SLOPE * y)


def single_conv_relu_batch(x_nchw, w_oihw, bias, gamma, beta,
                           compute_dtype=jnp.bfloat16, tile_nhw=512):
    """Forward pass equivalent to the PyTorch module (inputs/outputs NCHW).

    `bias` is accepted for API parity but is mathematically cancelled by the
    training-mode BatchNorm mean subtraction, so it never enters the kernel.
    """
    del bias  # exactly cancelled by BN(train) mean subtraction
    N, Cin, H, W = x_nchw.shape
    Cout = w_oihw.shape[0]
    NHW = N * H * W
    K = 9 * Cin

    # ---- tile / padding selection (lane axis must stay a multiple of 128) ----
    tile = max(128, (min(tile_nhw, 2048) // 128) * 128)
    nhw_128 = -(-NHW // 128) * 128
    tile = min(tile, nhw_128)
    nhw_pad = -(-nhw_128 // tile) * tile       # multiple of tile (and of 128)
    num_tiles = nhw_pad // tile

    # ---- im2col in the wrapper (small-shape path; see TODO for production) ----
    x_nhwc = jnp.transpose(x_nchw, (0, 2, 3, 1)).astype(jnp.float32)
    x_padded = jnp.pad(x_nhwc, ((0, 0), (1, 1), (1, 1), (0, 0)))
    cols = jnp.stack(
        [x_padded[:, kh:kh + H, kw:kw + W, :] for kh in range(3) for kw in range(3)],
        axis=0)                                                 # (9, N, H, W, Cin)
    patches_t = jnp.transpose(cols, (0, 4, 1, 2, 3)).reshape(K, NHW)
    if nhw_pad != NHW:
        patches_t = jnp.pad(patches_t, ((0, 0), (0, nhw_pad - NHW)))
    patches_t = patches_t.astype(compute_dtype)

    # Weights folded to (Cout, 9*Cin) matching the patch row order.
    w_mat = jnp.transpose(w_oihw, (0, 2, 3, 1)).reshape(Cout, K).astype(compute_dtype)

    g2 = gamma.reshape(Cout, 1).astype(jnp.float32)
    be2 = beta.reshape(Cout, 1).astype(jnp.float32)

    # ---- VMEM budget: resident output + double-buffered patch tiles + params ----
    op_bytes = jnp.dtype(compute_dtype).itemsize
    out_bytes = Cout * nhw_pad * 4
    tile_bytes = K * tile * op_bytes
    w_bytes = Cout * K * op_bytes
    vmem_limit = min(100 * 1024 * 1024,
                     2 * (out_bytes + 3 * tile_bytes + 2 * w_bytes) + (4 << 20))

    kernel = functools.partial(conv_bn_lrelu_kernel, inv_n=float(1.0 / NHW))

    out_cp = pl.pallas_call(
        kernel,
        out_shape=jax.ShapeDtypeStruct((Cout, nhw_pad), jnp.float32),
        grid=(num_tiles,),
        in_specs=[
            pl.BlockSpec((K, tile), lambda t: (0, t)),
            pl.BlockSpec((Cout, K), lambda t: (0, 0)),
            pl.BlockSpec((Cout, 1), lambda t: (0, 0)),
            pl.BlockSpec((Cout, 1), lambda t: (0, 0)),
        ],
        out_specs=pl.BlockSpec((Cout, nhw_pad), lambda t: (0, 0)),
        scratch_shapes=[pltpu.VMEM((Cout, 1), jnp.float32),
                        pltpu.VMEM((Cout, 1), jnp.float32)],
        compiler_params=pltpu.CompilerParams(
            dimension_semantics=("arbitrary",),
            vmem_limit_bytes=int(vmem_limit)),
    )(patches_t, w_mat, g2, be2)

    # (Cout, NHW_pad) -> drop padding -> (N, Cout, H, W)
    out_cp = out_cp[:, :NHW]
    return jnp.transpose(out_cp.reshape(Cout, N, H, W), (1, 0, 2, 3))


def _reference(x_nchw, w_oihw, bias, gamma, beta):
    """Plain-JAX reference (lax conv + BN(train) + LeakyReLU) for validation."""
    y = lax.conv_general_dilated(
        x_nchw, w_oihw, window_strides=(1, 1), padding=((1, 1), (1, 1)),
        dimension_numbers=("NCHW", "OIHW", "NCHW"))
    y = y + bias[None, :, None, None]
    mean = jnp.mean(y, axis=(0, 2, 3), keepdims=True)
    var = jnp.mean((y - mean) ** 2, axis=(0, 2, 3), keepdims=True)
    y = (y - mean) * lax.rsqrt(var + BN_EPS)
    y = gamma[None, :, None, None] * y + beta[None, :, None, None]
    return jnp.where(y >= 0, y, NEG_SLOPE * y)


if __name__ == "__main__":
    # Small shapes consistent with the module: N=2, in_ch=4, out_ch=8, 16x16 spatial.
    N, Cin, Cout, H, W = 2, 4, 8, 16, 16

    key = jax.random.PRNGKey(0)
    kx, kw, kb = jax.random.split(key, 3)

    x = jax.random.normal(kx, (N, Cin, H, W), dtype=jnp.float32)

    # Deterministic parameter init (matches PyTorch default init bounds).
    fan_in = Cin * 3 * 3
    w_bound = (1.0 / fan_in) ** 0.5
    weight = jax.random.uniform(kw, (Cout, Cin, 3, 3), jnp.float32,
                                minval=-w_bound, maxval=w_bound)
    bias = jax.random.uniform(kb, (Cout,), jnp.float32,
                              minval=-w_bound, maxval=w_bound)
    gamma = jnp.ones((Cout,), jnp.float32)   # BatchNorm2d weight default
    beta = jnp.zeros((Cout,), jnp.float32)   # BatchNorm2d bias default

    ref = jax.block_until_ready(_reference(x, weight, bias, gamma, beta))

    # f32 matmul operands, default TILE (single grid step at this size): tight check.
    out_f32 = jax.block_until_ready(
        single_conv_relu_batch(x, weight, bias, gamma, beta,
                               compute_dtype=jnp.float32))
    assert out_f32.shape == (N, Cout, H, W)
    assert jnp.allclose(out_f32, ref, atol=2e-3, rtol=2e-3), "f32 mismatch vs reference"

    # f32, TILE=128 -> exercises the multi-tile accumulation + epilogue path.
    out_f32_mt = jax.block_until_ready(
        single_conv_relu_batch(x, weight, bias, gamma, beta,
                               compute_dtype=jnp.float32, tile_nhw=128))
    assert jnp.allclose(out_f32_mt, ref, atol=2e-3, rtol=2e-3), "multi-tile mismatch"

    # bf16 matmul operands (f32 accumulation / BN): looser tolerance from bf16 rounding.
    out_bf16 = jax.block_until_ready(
        single_conv_relu_batch(x, weight, bias, gamma, beta,
                               compute_dtype=jnp.bfloat16))
    assert out_bf16.shape == (N, Cout, H, W)
    assert jnp.allclose(out_bf16, ref, atol=3e-2, rtol=3e-2), "bf16 mismatch vs reference"

    print("KERNEL_OK")
</pallas_src>

<mosaic_0001>
module attributes {stable_mosaic.version = 11 : i64} {
  func.func @conv_bn_lrelu_kernel(%arg0: i32, %arg1: memref<36x512xf32, #tpu.memory_space<vmem>>, %arg2: memref<8x36xf32, #tpu.memory_space<vmem>>, %arg3: memref<8x1xf32, #tpu.memory_space<vmem>>, %arg4: memref<8x1xf32, #tpu.memory_space<vmem>>, %arg5: memref<8x512xf32, #tpu.memory_space<vmem>>, %arg6: memref<8x1xf32, #tpu.memory_space<vmem>>, %arg7: memref<8x1xf32, #tpu.memory_space<vmem>>) attributes {dimension_semantics = [#tpu.dimension_semantics<arbitrary>], iteration_bounds = array<i64: 1>, scalar_prefetch = 0 : i64, scratch_operands = 2 : i64, tpu.core_type = #tpu.core_type<tc>, window_params = [{transform_indices = @transform_0, window_bounds = array<i64: 36, 512>}, {pipeline_mode = #tpu.pipeline_mode<synchronous>, transform_indices = @transform_1, window_bounds = array<i64: 8, 36>}, {pipeline_mode = #tpu.pipeline_mode<synchronous>, transform_indices = @transform_2, window_bounds = array<i64: 8, 1>}, {pipeline_mode = #tpu.pipeline_mode<synchronous>, transform_indices = @transform_3, window_bounds = array<i64: 8, 1>}, {pipeline_mode = #tpu.pipeline_mode<synchronous>, transform_indices = @transform_4, window_bounds = array<i64: 8, 512>}]} {
    %c0_i32 = arith.constant 0 : i32
    %0 = arith.cmpi eq, %arg0, %c0_i32 : i32
    %1 = arith.extui %0 : i1 to i32
    %c0_i32_0 = arith.constant 0 : i32
    %2 = arith.cmpi ne, %1, %c0_i32_0 : i32
    scf.if %2 {
      %cst_17 = arith.constant 0.000000e+00 : f32
      %24 = vector.broadcast %cst_17 : f32 to vector<8x1xf32>
      %c0_18 = arith.constant 0 : index
      %c0_19 = arith.constant 0 : index
      %25 = vector.load %arg6[%c0_18, %c0_19] : memref<8x1xf32, #tpu.memory_space<vmem>>, vector<8x1xf32>
      tpu.vector_store %arg6[%c0_18, %c0_19], %24 {strides = array<i32>} : memref<8x1xf32, #tpu.memory_space<vmem>>, vector<8x1xf32>,
      %cst_20 = arith.constant 0.000000e+00 : f32
      %26 = vector.broadcast %cst_20 : f32 to vector<8x1xf32>
      %c0_21 = arith.constant 0 : index
      %c0_22 = arith.constant 0 : index
      %27 = vector.load %arg7[%c0_21, %c0_22] : memref<8x1xf32, #tpu.memory_space<vmem>>, vector<8x1xf32>
      tpu.vector_store %arg7[%c0_21, %c0_22], %26 {strides = array<i32>} : memref<8x1xf32, #tpu.memory_space<vmem>>, vector<8x1xf32>,
    } else {
    }
    %c0 = arith.constant 0 : index
    %c0_1 = arith.constant 0 : index
    %3 = vector.load %arg2[%c0, %c0_1] : memref<8x36xf32, #tpu.memory_space<vmem>>, vector<8x36xf32>
    %c0_2 = arith.constant 0 : index
    %c0_3 = arith.constant 0 : index
    %4 = vector.load %arg1[%c0_2, %c0_3] : memref<36x512xf32, #tpu.memory_space<vmem>>, vector<36x512xf32>
    %cst = arith.constant dense<0.000000e+00> : vector<8x512xf32>
    %5 = tpu.matmul %3, %4, %cst {dimension_numbers = #tpu.dot_dimension_numbers<[1], [0], [0], [1], [0, 0, 1, 1], [], []>} : vector<8x36xf32>, vector<36x512xf32>, vector<8x512xf32> -> vector<8x512xf32>
    %c0_4 = arith.constant 0 : index
    %c0_5 = arith.constant 0 : index
    %6 = vector.load %arg6[%c0_4, %c0_5] : memref<8x1xf32, #tpu.memory_space<vmem>>, vector<8x1xf32>
    %cst_6 = arith.constant dense<0.000000e+00> : vector<8xf32>
    %7 = vector.multi_reduction <add>, %5, %cst_6 [1] : vector<8x512xf32> to vector<8xf32>
    %8 = vector.shape_cast %7 : vector<8xf32> to vector<8x1xf32>
    %9 = arith.addf %6, %8 : vector<8x1xf32>
    %c0_7 = arith.constant 0 : index
    %c0_8 = arith.constant 0 : index
    %10 = vector.load %arg6[%c0_7, %c0_8] : memref<8x1xf32, #tpu.memory_space<vmem>>, vector<8x1xf32>
    tpu.vector_store %arg6[%c0_7, %c0_8], %9 {strides = array<i32>} : memref<8x1xf32, #tpu.memory_space<vmem>>, vector<8x1xf32>,
    %c0_9 = arith.constant 0 : index
    %c0_10 = arith.constant 0 : index
    %11 = vector.load %arg7[%c0_9, %c0_10] : memref<8x1xf32, #tpu.memory_space<vmem>>, vector<8x1xf32>
    %12 = arith.mulf %5, %5 : vector<8x512xf32>
    %cst_11 = arith.constant dense<0.000000e+00> : vector<8xf32>
    %13 = vector.multi_reduction <add>, %12, %cst_11 [1] : vector<8x512xf32> to vector<8xf32>
    %14 = vector.shape_cast %13 : vector<8xf32> to vector<8x1xf32>
    %15 = arith.addf %11, %14 : vector<8x1xf32>
    %c0_12 = arith.constant 0 : index
    %c0_13 = arith.constant 0 : index
    %16 = vector.load %arg7[%c0_12, %c0_13] : memref<8x1xf32, #tpu.memory_space<vmem>>, vector<8x1xf32>
    tpu.vector_store %arg7[%c0_12, %c0_13], %15 {strides = array<i32>} : memref<8x1xf32, #tpu.memory_space<vmem>>, vector<8x1xf32>,
    %c512_i32 = arith.constant 512 : i32
    %17 = arith.muli %arg0, %c512_i32 : i32
    %18 = tpu.assume_multiple %17, 512 : i32
    %c0_14 = arith.constant 0 : index
    %19 = arith.index_cast %18 : i32 to index
    %20 = vector.load %arg5[%c0_14, %19] : memref<8x512xf32, #tpu.memory_space<vmem>>, vector<8x512xf32>
    tpu.vector_store %arg5[%c0_14, %19], %5 {strides = array<i32>} : memref<8x512xf32, #tpu.memory_space<vmem>>, vector<8x512xf32>,
    %c0_i32_15 = arith.constant 0 : i32
    %21 = arith.cmpi eq, %arg0, %c0_i32_15 : i32
    %22 = arith.extui %21 : i1 to i32
    %c0_i32_16 = arith.constant 0 : i32
    %23 = arith.cmpi ne, %22, %c0_i32_16 : i32
    scf.if %23 {
      %c0_17 = arith.constant 0 : index
      %c0_18 = arith.constant 0 : index
      %24 = vector.load %arg6[%c0_17, %c0_18] : memref<8x1xf32, #tpu.memory_space<vmem>>, vector<8x1xf32>
      %cst_19 = arith.constant 0.001953125 : f32
      %25 = vector.broadcast %cst_19 : f32 to vector<8x1xf32>
      %26 = arith.mulf %24, %25 : vector<8x1xf32>
      %c0_20 = arith.constant 0 : index
      %c0_21 = arith.constant 0 : index
      %27 = vector.load %arg7[%c0_20, %c0_21] : memref<8x1xf32, #tpu.memory_space<vmem>>, vector<8x1xf32>
      %cst_22 = arith.constant 0.001953125 : f32
      %28 = vector.broadcast %cst_22 : f32 to vector<8x1xf32>
      %29 = arith.mulf %27, %28 : vector<8x1xf32>
      %30 = arith.mulf %26, %26 : vector<8x1xf32>
      %31 = arith.subf %29, %30 : vector<8x1xf32>
      %cst_23 = arith.constant 9.99999974E-6 : f32
      %32 = vector.broadcast %cst_23 : f32 to vector<8x1xf32>
      %33 = arith.addf %31, %32 : vector<8x1xf32>
      %34 = math.rsqrt %33 : vector<8x1xf32>
      %c0_24 = arith.constant 0 : index
      %c0_25 = arith.constant 0 : index
      %35 = vector.load %arg3[%c0_24, %c0_25] : memref<8x1xf32, #tpu.memory_space<vmem>>, vector<8x1xf32>
      %36 = arith.mulf %35, %34 : vector<8x1xf32>
      %c0_26 = arith.constant 0 : index
      %c0_27 = arith.constant 0 : index
      %37 = vector.load %arg4[%c0_26, %c0_27] : memref<8x1xf32, #tpu.memory_space<vmem>>, vector<8x1xf32>
      %38 = arith.mulf %26, %36 : vector<8x1xf32>
      %39 = arith.subf %37, %38 : vector<8x1xf32>
      %c0_28 = arith.constant 0 : index
      %c0_29 = arith.constant 0 : index
      %40 = vector.load %arg5[%c0_28, %c0_29] : memref<8x512xf32, #tpu.memory_space<vmem>>, vector<8x512xf32>
      %41 = vector.broadcast %36 : vector<8x1xf32> to vector<8x512xf32>
      %42 = arith.mulf %40, %41 : vector<8x512xf32>
      %43 = vector.broadcast %39 : vector<8x1xf32> to vector<8x512xf32>
      %44 = arith.addf %42, %43 : vector<8x512xf32>
      %cst_30 = arith.constant 0.000000e+00 : f32
      %45 = vector.broadcast %cst_30 : f32 to vector<8x512xf32>
      %46 = arith.cmpf oge, %44, %45 : vector<8x512xf32>
      %cst_31 = arith.constant 0.00999999977 : f32
      %47 = vector.broadcast %cst_31 : f32 to vector<8x512xf32>
      %48 = arith.mulf %47, %44 : vector<8x512xf32>
      %49 = arith.select %46, %44, %48 : vector<8x512xi1>, vector<8x512xf32>
      %c0_32 = arith.constant 0 : index
      %c0_33 = arith.constant 0 : index
      %50 = vector.load %arg5[%c0_32, %c0_33] : memref<8x512xf32, #tpu.memory_space<vmem>>, vector<8x512xf32>
      tpu.vector_store %arg5[%c0_32, %c0_33], %49 {strides = array<i32>} : memref<8x512xf32, #tpu.memory_space<vmem>>, vector<8x512xf32>,
    } else {
    }
    return
  }
  func.func @transform_0(%arg0: i32) -> (i32, i32) {
    %c0_i32 = arith.constant 0 : i32
    %c0_i32_0 = arith.constant 0 : i32
    return %c0_i32, %arg0 : i32, i32
  }
  func.func @transform_1(%arg0: i32) -> (i32, i32) {
    %c0_i32 = arith.constant 0 : i32
    %c0_i32_0 = arith.constant 0 : i32
    %c0_i32_1 = arith.constant 0 : i32
    return %c0_i32, %c0_i32_0 : i32, i32
  }
  func.func @transform_2(%arg0: i32) -> (i32, i32) {
    %c0_i32 = arith.constant 0 : i32
    %c0_i32_0 = arith.constant 0 : i32
    %c0_i32_1 = arith.constant 0 : i32
    return %c0_i32, %c0_i32_0 : i32, i32
  }
  func.func @transform_3(%arg0: i32) -> (i32, i32) {
    %c0_i32 = arith.constant 0 : i32
    %c0_i32_0 = arith.constant 0 : i32
    %c0_i32_1 = arith.constant 0 : i32
    return %c0_i32, %c0_i32_0 : i32, i32
  }
  func.func @transform_4(%arg0: i32) -> (i32, i32) {
    %c0_i32 = arith.constant 0 : i32
    %c0_i32_0 = arith.constant 0 : i32
    %c0_i32_1 = arith.constant 0 : i32
    return %c0_i32, %c0_i32_0 : i32, i32
  }
}

</mosaic_0001>

<llo_original>
// kernel: tpu_custom_call.1
$region0: #{tpu_custom_call.1}
  #allocation0 [shape = 'u32[]', space=smem, size = 0x4, offset = 0x4, fixed_abs, tag = 'smem constant byte address 0x4 - core index']
  #allocation1 [shape = 'u32[72,128]{1,0:T(1,128)}', space=vmem, size = 0x9000, scoped, tag = 'internal scratch']
  #allocation2 [shape = 'f32[8,1]{1,0:T(8,128)}', space=vmem, size = 0x1000, scoped, tag = 'scratch operand']
  #allocation3 [shape = 'f32[8,1]{1,0:T(8,128)}', space=vmem, size = 0x1000, scoped, tag = 'scratch operand']
  %s0 = inlined_call_operand.hbm [shape: f32[36,512], index: 0, kind: input, shape index: {}]
  %s1 = inlined_call_operand.vmem [shape: f32[8,36], index: 1, kind: input, shape index: {}]
  %s2 = inlined_call_operand.vmem [shape: f32[8,1], index: 2, kind: input, shape index: {}]
  %s3 = inlined_call_operand.vmem [shape: f32[8,1], index: 3, kind: input, shape index: {}]
  %s4 = inlined_call_operand.hbm [shape: f32[8,512], index: 4, kind: output, shape index: {}]
  %s5 = sld [smem:[#allocation0]]
  $region38: #{tpu_custom_call.1} parent=0
    _
  %s7 = ssub.s32 1, %s5
  %s8 = scalar_select 0, %s7, %s5
  $region1: #{tpu_custom_call.1} parent=0
    #allocation4 [shape = 'u8[81920]{0}', space=vmem, size = 0x14000, scoped, tag = 'input window, operand 0, single buffered']
    #allocation5 [shape = 's32[1]{0}', space=sflag, size = 0x4, scoped, tag = 'scoped memory for tpu_custom_call.1']
    #allocation6 [shape = 's32[1]{0}', space=sflag, size = 0x4, scoped, tag = 'scoped memory for tpu_custom_call.1']
    #allocation7 [shape = 'u8[16384]{0}', space=vmem, size = 0x4000, scoped, tag = 'output window, operand 0, single buffered']
    %9 = vsyncpa [#allocation5], 0
    %10 = vsyncpa [#allocation6], 0
    // Predicated region
    $region2: #{tpu_custom_call.1} parent=1 // pred_check
      _
    $region3: #{tpu_custom_call.1} parent=1 // pred_check_branch
      %12 = sbr.rel (0) target = $region5
    $region4: #{tpu_custom_call.1} parent=1 // pred_region
      %14 = vsyncadd [#allocation5], 0
      %s15 = sshll.u32 %s0, 4
      %s16 = int_to_ptr.hbm [resolvable:$true] %s15
      %s17 = sshll.u32 [#allocation4], 4
      %s18 = int_to_ptr.vmem [resolvable:$true] %s17
      %23 = dma.hbm_to_vmem [thread:$0]  %s16, 2560, %s18, [#allocation5], 512, 512, 32
    $region5: #{tpu_custom_call.1} parent=1 // pred_fallthru
      _
    // Predicated region
    $region6: #{tpu_custom_call.1} parent=1 // pred_check
      _
    $region7: #{tpu_custom_call.1} parent=1 // pred_check_branch
      %25 = sbr.rel (0) target = $region9
    $region8: #{tpu_custom_call.1} parent=1 // pred_region
      _
    $region9: #{tpu_custom_call.1} parent=1 // pred_fallthru
      _
    // Predicated region
    $region10: #{tpu_custom_call.1} parent=1 // pred_check
      _
    $region11: #{tpu_custom_call.1} parent=1 // pred_check_branch
      %27 = sbr.rel (0) target = $region13
    $region12: #{tpu_custom_call.1} parent=1 // pred_region
      _
    $region13: #{tpu_custom_call.1} parent=1 // pred_fallthru
      _
    // Predicated region
    $region14: #{tpu_custom_call.1} parent=1 // pred_check
      _
    $region15: #{tpu_custom_call.1} parent=1 // pred_check_branch
      %29 = sbr.rel (0) target = $region17
    $region16: #{tpu_custom_call.1} parent=1 // pred_region
      _
    $region17: #{tpu_custom_call.1} parent=1 // pred_fallthru
      _
    // Predicated region
    $region18: #{tpu_custom_call.1} parent=1 // pred_check
      _
    $region19: #{tpu_custom_call.1} parent=1 // pred_check_branch
      %31 = sbr.rel (0) target = $region21
    $region20: #{tpu_custom_call.1} parent=1 // pred_region
      %33 = dma.done [#allocation5], 2560
    $region21: #{tpu_custom_call.1} parent=1 // pred_fallthru
      _
    %p34 = scmp.eq.s32.totalorder 0, 0
    // Predicated region
    $region22: #{tpu_custom_call.1} parent=1 // pred_check
      %p35 = pneg %p34
    $region23: #{tpu_custom_call.1} parent=1 // pred_check_branch
      %37 = sbr.rel (%p35) target = $region25
    $region24: #{tpu_custom_call.1} parent=1 // pred_region
      %vm38 = vcmask 7168
      %39 = vst.msk [vmem:[#allocation2] sm:$0xff] %vm38, 0.0
      %40 = vst.msk [vmem:[#allocation3] sm:$0xff] %vm38, 0.0
    $region25: #{tpu_custom_call.1} parent=1 // pred_fallthru
      _
    %v41 = vld [vmem:[%s1] sm:$0xff]
    %v42 = vld [vmem:[#allocation4] sm:$0xff]
    %v43 = vld [vmem:[#allocation4 + $0x8] sm:$0xff]
    %v44 = vld [vmem:[#allocation4 + $0x10] sm:$0xff]
    %v45 = vld [vmem:[#allocation4 + $0x18] sm:$0xff]
    %v46 = vld [vmem:[#allocation4 + $0x20] sm:$0xff]
    %v47 = vld [vmem:[#allocation4 + $0x28] sm:$0xff]
    %v48 = vld [vmem:[#allocation4 + $0x30] sm:$0xff]
    %v49 = vld [vmem:[#allocation4 + $0x38] sm:$0xff]
    %v50 = vld [vmem:[#allocation4 + $0x40] sm:$0xff]
    %v51 = vld [vmem:[#allocation4 + $0x48] sm:$0xff]
    %v52 = vld [vmem:[#allocation4 + $0x50] sm:$0xff]
    %v53 = vld [vmem:[#allocation4 + $0x58] sm:$0xff]
    %v54 = vld [vmem:[#allocation4 + $0x60] sm:$0xff]
    %v55 = vld [vmem:[#allocation4 + $0x68] sm:$0xff]
    %v56 = vld [vmem:[#allocation4 + $0x70] sm:$0xff]
    %v57 = vld [vmem:[#allocation4 + $0x78] sm:$0xff]
    %v58 = vld [vmem:[#allocation4 + $0x80] sm:$0xf]
    %v59 = vld [vmem:[#allocation4 + $0x88] sm:$0xf]
    %v60 = vld [vmem:[#allocation4 + $0x90] sm:$0xf]
    %v61 = vld [vmem:[#allocation4 + $0x98] sm:$0xf]
    %vm62 = vcmask 293888
    %v64 = vsel %vm62, %v41, 0
    %vm66 = vcmask 1043456
    %v68 = vsel %vm66, %v58, 0
    %v71 = vsel %vm66, %v59, 0
    %v74 = vsel %vm66, %v60, 0
    %v77 = vsel %vm66, %v61, 0
    %79 = vmatpush.msra.mxu0 0.0
    %80 = vmatpush.msra.mxu0 0.0
    %81 = vmatpush.msra.mxu0 0.0
    %82 = vmatpush.msra.mxu0 0.0
    %83 = vmatpush.msra.mxu0 0.0
    %84 = vmatpush.msra.mxu0 0.0
    %85 = vmatpush.msra.mxu0 0.0
    %86 = vmatpush.msra.mxu0 0.0
    %87 = vmatpush.msra.mxu0 0.0
    %88 = vmatpush.msra.mxu0 0.0
    %89 = vmatpush.msra.mxu0 0.0
    %90 = vmatpush.msra.mxu0 %v68
    %91 = vmatpush.msra.mxu0 %v54
    %92 = vmatpush.msra.mxu0 %v50
    %93 = vmatpush.msra.mxu0 %v46
    %94 = vmatpush.msra.mxu0 %v42
    %95 = vmatmul.f32.gmra.mxu0 %v64
    %v96 = vpop.f32.mrf.mxu0
    %v97 = vadd.f32 0.0, %v96
    %98 = vdwg.mxu0
    %99 = vmatpush.msra.mxu0 0.0
    %100 = vmatpush.msra.mxu0 0.0
    %101 = vmatpush.msra.mxu0 0.0
    %102 = vmatpush.msra.mxu0 0.0
    %103 = vmatpush.msra.mxu0 0.0
    %104 = vmatpush.msra.mxu0 0.0
    %105 = vmatpush.msra.mxu0 0.0
    %106 = vmatpush.msra.mxu0 0.0
    %107 = vmatpush.msra.mxu0 0.0
    %108 = vmatpush.msra.mxu0 0.0
    %109 = vmatpush.msra.mxu0 0.0
    %110 = vmatpush.msra.mxu0 %v71
    %111 = vmatpush.msra.mxu0 %v55
    %112 = vmatpush.msra.mxu0 %v51
    %113 = vmatpush.msra.mxu0 %v47
    %114 = vmatpush.msra.mxu0 %v43
    %115 = vmatmul.f32.gmra.mxu0 %v64
    %v116 = vpop.f32.mrf.mxu0
    %v117 = vadd.f32 0.0, %v116
    %118 = vdwg.mxu0
    %119 = vmatpush.msra.mxu0 0.0
    %120 = vmatpush.msra.mxu0 0.0
    %121 = vmatpush.msra.mxu0 0.0
    %122 = vmatpush.msra.mxu0 0.0
    %123 = vmatpush.msra.mxu0 0.0
    %124 = vmatpush.msra.mxu0 0.0
    %125 = vmatpush.msra.mxu0 0.0
    %126 = vmatpush.msra.mxu0 0.0
    %127 = vmatpush.msra.mxu0 0.0
    %128 = vmatpush.msra.mxu0 0.0
    %129 = vmatpush.msra.mxu0 0.0
    %130 = vmatpush.msra.mxu0 %v74
    %131 = vmatpush.msra.mxu0 %v56
    %132 = vmatpush.msra.mxu0 %v52
    %133 = vmatpush.msra.mxu0 %v48
    %134 = vmatpush.msra.mxu0 %v44
    %135 = vmatmul.f32.gmra.mxu0 %v64
    %v136 = vpop.f32.mrf.mxu0
    %v137 = vadd.f32 0.0, %v136
    %138 = vdwg.mxu0
    %139 = vmatpush.msra.mxu0 0.0
    %140 = vmatpush.msra.mxu0 0.0
    %141 = vmatpush.msra.mxu0 0.0
    %142 = vmatpush.msra.mxu0 0.0
    %143 = vmatpush.msra.mxu0 0.0
    %144 = vmatpush.msra.mxu0 0.0
    %145 = vmatpush.msra.mxu0 0.0
    %146 = vmatpush.msra.mxu0 0.0
    %147 = vmatpush.msra.mxu0 0.0
    %148 = vmatpush.msra.mxu0 0.0
    %149 = vmatpush.msra.mxu0 0.0
    %150 = vmatpush.msra.mxu0 %v77
    %151 = vmatpush.msra.mxu0 %v57
    %152 = vmatpush.msra.mxu0 %v53
    %153 = vmatpush.msra.mxu0 %v49
    %154 = vmatpush.msra.mxu0 %v45
    %155 = vmatmul.f32.gmra.mxu0 %v64
    %v156 = vpop.f32.mrf.mxu0
    %v157 = vadd.f32 0.0, %v156
    %158 = vdwg.mxu0
    %v159 = vld [vmem:[#allocation2] sm:$0xff]
    %v160 = vadd.f32 %v97, %v117
    %v161 = vadd.f32 %v160, %v137
    %v162 = vadd.f32 %v161, %v157
    %163 = vadd.xlane.f32.xlu0 %v162
    %v164 = vpop.xlane.xlu0 %163
    %v165 = vadd.f32 %v159, %v164
    %vm166 = vcmask 7168
    %167 = vst.msk [vmem:[#allocation2] sm:$0xff] %vm166, %v165
    %v168 = vld [vmem:[#allocation3] sm:$0xff]
    %v169 = vmul.f32 %v97, %v97
    %v170 = vmul.f32 %v117, %v117
    %v171 = vmul.f32 %v137, %v137
    %v172 = vmul.f32 %v157, %v157
    %v173 = vadd.f32 %v169, %v170
    %v174 = vadd.f32 %v173, %v171
    %v175 = vadd.f32 %v174, %v172
    %176 = vadd.xlane.f32.xlu0 %v175
    %v177 = vpop.xlane.xlu0 %176
    %v178 = vadd.f32 %v168, %v177
    %179 = vst.msk [vmem:[#allocation3] sm:$0xff] %vm166, %v178
    %s180 = smul.u32 0, 512
    %s181 = sshra.s32 %s180, 7
    %s182 = sand.u32 %s180, 127
    %s183 = smul.addr %s181, 8
    %s184 = scalar_lea.vmem [#allocation7], %s183
    %185 = vst [vmem:[%s184] sm:$0xff] %v97
    %186 = vst [vmem:[%s184 + $0x8] sm:$0xff] %v117
    %187 = vst [vmem:[%s184 + $0x10] sm:$0xff] %v137
    %188 = vst [vmem:[%s184 + $0x18] sm:$0xff] %v157
    // Predicated region
    $region26: #{tpu_custom_call.1} parent=1 // pred_check
      %p189 = pneg %p34
    $region27: #{tpu_custom_call.1} parent=1 // pred_check_branch
      %191 = sbr.rel (%p189) target = $region29
    $region28: #{tpu_custom_call.1} parent=1 // pred_region
      %v192 = vld [vmem:[#allocation2] sm:$0xff]
      %v193 = vmul.f32 %v192, 0.001953125
      %v194 = vld [vmem:[#allocation3] sm:$0xff]
      %v195 = vmul.f32 %v194, 0.001953125
      %v196 = vmul.f32 %v193, %v193
      %v197 = vsub.f32 %v195, %v196
      %v198 = vadd.f32 %v197, 1e-05
      %v199 = vrsqrt.pop %v198
      %v200 = vmul.f32 %v199, %v198
      %v201 = vmul.f32 %v200, %v199
      %v202 = vmul.f32 0.5, %v201
      %v203 = vsub.f32 1.5, %v202
      %v204 = vmul.f32 %v199, %v203
      %vm205 = vweird.f32 %v198
      %vm206 = vweird.f32 %v199
      %vm207 = vmor %vm205, %vm206
      %v208 = vsel %vm207, %v199, %v204
      %v209 = vld [vmem:[%s2] sm:$0xff]
      %v210 = vmul.f32 %v209, %v208
      %v211 = vld [vmem:[%s3] sm:$0xff]
      %v212 = vmul.f32 %v193, %v210
      %v213 = vsub.f32 %v211, %v212
      %v214 = vld [vmem:[#allocation7] sm:$0xff]
      %v215 = vld [vmem:[#allocation7 + $0x8] sm:$0xff]
      %v216 = vld [vmem:[#allocation7 + $0x10] sm:$0xff]
      %v217 = vld [vmem:[#allocation7 + $0x18] sm:$0xff]
      %219 = vset.pattern.permute.xlu0 0
      %220 = vperm.xlu0 %219, %v210
      %v221 = vpop.permute.xlu0 %220
      %v223 = vmul.f32 %v214, %v221
      %v224 = vmul.f32 %v215, %v221
      %v225 = vmul.f32 %v216, %v221
      %v226 = vmul.f32 %v217, %v221
      %228 = vset.pattern.permute.xlu0 0
      %229 = vperm.xlu0 %228, %v213
      %v230 = vpop.permute.xlu0 %229
      %v232 = vadd.f32 %v223, %v230
      %v233 = vadd.f32 %v224, %v230
      %v234 = vadd.f32 %v225, %v230
      %v235 = vadd.f32 %v226, %v230
      %vm236 = vcmp.ge.f32.partialorder %v232, 0.0
      %vm237 = vcmp.ge.f32.partialorder %v233, 0.0
      %vm238 = vcmp.ge.f32.partialorder %v234, 0.0
      %vm239 = vcmp.ge.f32.partialorder %v235, 0.0
      %v240 = vmul.f32 %v232, 0.01
      %v241 = vmul.f32 %v233, 0.01
      %v242 = vmul.f32 %v234, 0.01
      %v243 = vmul.f32 %v235, 0.01
      %v244 = vsel %vm236, %v232, %v240
      %v245 = vsel %vm237, %v233, %v241
      %v246 = vsel %vm238, %v234, %v242
      %v247 = vsel %vm239, %v235, %v243
      %248 = vst [vmem:[#allocation7] sm:$0xff] %v244
      %249 = vst [vmem:[#allocation7 + $0x8] sm:$0xff] %v245
      %250 = vst [vmem:[#allocation7 + $0x10] sm:$0xff] %v246
      %251 = vst [vmem:[#allocation7 + $0x18] sm:$0xff] %v247
    $region29: #{tpu_custom_call.1} parent=1 // pred_fallthru
      _
    // Predicated region
    $region30: #{tpu_custom_call.1} parent=1 // pred_check
      _
    $region31: #{tpu_custom_call.1} parent=1 // pred_check_branch
      %253 = sbr.rel (0) target = $region33
    $region32: #{tpu_custom_call.1} parent=1 // pred_region
      %255 = vsyncadd [#allocation6], 0
      %s257 = sshll.u32 [#allocation7], 4
      %s258 = int_to_ptr.vmem [resolvable:$true] %s257
      %s259 = sshll.u32 %s4, 4
      %s260 = int_to_ptr.hbm [resolvable:$true] %s259
      %262 = dma.vmem_to_hbm [thread:$0]  %s258, 512, %s260, [#allocation6]
    $region33: #{tpu_custom_call.1} parent=1 // pred_fallthru
      _
    // Predicated region
    $region34: #{tpu_custom_call.1} parent=1 // pred_check
      _
    $region35: #{tpu_custom_call.1} parent=1 // pred_check_branch
      %264 = sbr.rel (0) target = $region37
    $region36: #{tpu_custom_call.1} parent=1 // pred_region
      %266 = dma.done [#allocation6], 512
    $region37: #{tpu_custom_call.1} parent=1 // pred_fallthru
      _
    %267 = vsyncpa [#allocation5], 1
    %268 = vsyncpa [#allocation6], 1

</llo_original>
